<compile_context>
chip_gen: v5e
topology: v5e:2x2
jax: 0.10.0
libtpu: 0.0.40
codegen_flags: <defaults>
</compile_context>

<pallas_src>
import functools

import jax
import jax.numpy as jnp
from jax.experimental import pallas as pl
from jax.experimental.pallas import tpu as pltpu

EPS = 1e-6


def _round_up(x, m):
    return ((x + m - 1) // m) * m


def _vn_linear_leaky_relu_kernel(w_ref, x0_ref, x1_ref, x2_ref,
                                 o0_ref, o1_ref, o2_ref, *,
                                 cout, cpad, negative_slope):
    """One grid step = (batch b, lane tile j); handles all 3 vector components."""
    w = w_ref[...]                                   # (2*cpad, Cin), resident
    neg = 1.0 - negative_slope

    def channel_maps(x_ref):
        # One fused MXU matmul per component: rows [0, cout) give p, rows
        # [cpad, cpad+cout) give d = (W_dir @ W_lin) x.  f32 accumulation.
        pd = jnp.dot(w, x_ref[0], preferred_element_type=jnp.float32)
        return pd[:cout], pd[cpad:cpad + cout]

    p0, d0 = channel_maps(x0_ref)
    p1, d1 = channel_maps(x1_ref)
    p2, d2 = channel_maps(x2_ref)

    dotprod = p0 * d0 + p1 * d1 + p2 * d2            # reduce over vector dim
    d_norm_sq = d0 * d0 + d1 * d1 + d2 * d2

    # out = p - (1-a) * min(dot, 0) / (dns + EPS) * d    (exact reciprocal)
    coef = (neg * jnp.minimum(dotprod, 0.0)) * pl.reciprocal(d_norm_sq + EPS)

    o0_ref[0] = (p0 - coef * d0).astype(o0_ref.dtype)
    o1_ref[0] = (p1 - coef * d1).astype(o1_ref.dtype)
    o2_ref[0] = (p2 - coef * d2).astype(o2_ref.dtype)


def vn_linear_leaky_relu(x, w_lin, w_dir, *, negative_slope=0.2, target_tn=512):
    """x: [B, Cin, 3, N]; w_lin: [Cout, Cin]; w_dir: [Cout, Cout] (bias-free)."""
    B, Cin, V, N = x.shape
    assert V == 3
    Cout = w_lin.shape[0]
    assert w_lin.shape == (Cout, Cin)
    assert w_dir.shape == (Cout, Cout)
    out_dtype = x.dtype

    # --- Pre-compose & stack the channel maps: W_stk = [W_lin ; W_dir @ W_lin].
    # The composed block is placed at a sublane-aligned (multiple-of-8) row
    # offset so the in-kernel p/d row split never needs a sublane shift.
    cpad = _round_up(Cout, 8)
    w_comp = jnp.dot(w_dir.astype(jnp.float32), w_lin.astype(jnp.float32),
                     precision=jax.lax.Precision.HIGHEST)
    w_stk = jnp.zeros((2 * cpad, Cin), jnp.float32)
    w_stk = w_stk.at[:Cout].set(w_lin.astype(jnp.float32))
    w_stk = w_stk.at[cpad:cpad + Cout].set(w_comp)
    w_stk = w_stk.astype(out_dtype)

    # --- Lane tile (multiple of 128); pad N UP to a multiple of tn instead of
    # shrinking tn toward 128 for awkward N.
    n128 = _round_up(N, 128)
    tn = min(max(128, (target_tn // 128) * 128), n128)

    def vmem_est(t):
        # double-buffered blocks + resident weight + matmul/epilogue temps
        return 4 * (2 * 2 * cpad * Cin            # stacked weight (x2 buffers)
                    + 3 * 2 * Cin * t             # 3 x-component input streams
                    + 3 * 2 * Cout * t            # 3 output streams
                    + 12 * cpad * t)              # matmul results + temps

    while tn > 128 and vmem_est(tn) > (40 << 20):
        tn -= 128

    # v7x has two TensorCores: with B == 1 make sure the lane axis still
    # yields >= 2 parallel grid steps.
    if B == 1 and n128 >= 256 and tn >= n128:
        tn = _round_up(n128 // 2, 128)

    n_pad = _round_up(N, tn)
    nt = n_pad // tn

    if n_pad != N:
        # Zero padding => p = d = 0 => min(dot,0) = 0 => out = 0 in padded cols.
        x = jnp.pad(x, ((0, 0), (0, 0), (0, 0), (0, n_pad - N)))
    # Free view: component v of sample n lives at flat lane v*n_pad + n.
    x_flat = x.reshape(B, Cin, 3 * n_pad)

    kernel = functools.partial(_vn_linear_leaky_relu_kernel,
                               cout=Cout, cpad=cpad,
                               negative_slope=float(negative_slope))

    # Three dense input streams, one per vector component (same HBM array read
    # at lane-block offsets v*nt + j).  pipeline_mode=pl.Buffered(3) on these
    # is an optional v7x knob; default double-buffering is kept here.
    x_specs = [
        pl.BlockSpec((1, Cin, tn), lambda b, j, vv=vv: (b, 0, vv * nt + j))
        for vv in range(3)
    ]
    out_specs = tuple(
        pl.BlockSpec((1, Cout, tn), lambda b, j: (b, 0, j)) for _ in range(3))
    out_shapes = tuple(
        jax.ShapeDtypeStruct((B, Cout, n_pad), out_dtype) for _ in range(3))

    o0, o1, o2 = pl.pallas_call(
        kernel,
        out_shape=out_shapes,
        grid=(B, nt),
        in_specs=[pl.BlockSpec((2 * cpad, Cin), lambda b, j: (0, 0)),  # W_stk
                  *x_specs],
        out_specs=out_specs,
        compiler_params=pltpu.CompilerParams(
            dimension_semantics=("parallel", "parallel"),
            vmem_limit_bytes=min(48 << 20, max(32 << 20, 2 * vmem_est(tn))),
        ),
        cost_estimate=pl.CostEstimate(
            flops=2 * B * 3 * n_pad * (2 * cpad) * Cin,
            transcendentals=B * Cout * n_pad,
            bytes_accessed=4 * (3 * B * n_pad * (Cin + Cout) + 2 * cpad * Cin),
        ),
    )(w_stk, x_flat, x_flat, x_flat)

    out = jnp.stack([o0, o1, o2], axis=2)      # [B, Cout, 3, n_pad]
    return out[..., :N] if n_pad != N else out


def vn_linear_leaky_relu_ref(x, w_lin, w_dir, *, negative_slope=0.2):
    """Pure-JAX reference mirroring the PyTorch VNLinearAndLeakyReLU forward."""
    hp = jax.lax.Precision.HIGHEST
    p = jnp.einsum("oi,bivn->bovn", w_lin, x, precision=hp)
    d = jnp.einsum("oi,bivn->bovn", w_dir, p, precision=hp)
    dotprod = jnp.sum(p * d, axis=2, keepdims=True)
    mask = (dotprod >= 0).astype(x.dtype)
    d_norm_sq = jnp.sum(d * d, axis=2, keepdims=True)
    return negative_slope * p + (1.0 - negative_slope) * (
        mask * p + (1.0 - mask) * (p - dotprod / (d_norm_sq + EPS) * d))


if __name__ == "__main__":
    negative_slope = 0.2
    key = jax.random.PRNGKey(0)
    kx1, kw1, kw2, kx2, kw3, kw4 = jax.random.split(key, 6)

    # Case 1: lane-aligned N with multiple lane tiles (exercises grid=(B, nt)).
    B, Cin, Cout, N = 2, 4, 8, 256
    x = jax.random.normal(kx1, (B, Cin, 3, N), dtype=jnp.float32)
    w_lin = jax.random.uniform(kw1, (Cout, Cin), jnp.float32,
                               -1.0 / Cin ** 0.5, 1.0 / Cin ** 0.5)
    w_dir = jax.random.uniform(kw2, (Cout, Cout), jnp.float32,
                               -1.0 / Cout ** 0.5, 1.0 / Cout ** 0.5)
    out = jax.block_until_ready(
        vn_linear_leaky_relu(x, w_lin, w_dir,
                             negative_slope=negative_slope, target_tn=128))
    ref = vn_linear_leaky_relu_ref(x, w_lin, w_dir, negative_slope=negative_slope)
    assert out.shape == ref.shape
    assert jnp.allclose(out, ref, atol=1e-3, rtol=1e-3), "case 1 mismatch"

    # Case 2: ragged N, odd channel counts, B == 1 (lane + Cout-row padding).
    B2, Cin2, Cout2, N2 = 1, 3, 5, 16
    x2 = jax.random.normal(kx2, (B2, Cin2, 3, N2), dtype=jnp.float32)
    w_lin2 = jax.random.uniform(kw3, (Cout2, Cin2), jnp.float32,
                                -1.0 / Cin2 ** 0.5, 1.0 / Cin2 ** 0.5)
    w_dir2 = jax.random.uniform(kw4, (Cout2, Cout2), jnp.float32,
                                -1.0 / Cout2 ** 0.5, 1.0 / Cout2 ** 0.5)
    out2 = jax.block_until_ready(
        vn_linear_leaky_relu(x2, w_lin2, w_dir2, negative_slope=negative_slope))
    ref2 = vn_linear_leaky_relu_ref(x2, w_lin2, w_dir2,
                                    negative_slope=negative_slope)
    assert out2.shape == ref2.shape
    assert jnp.allclose(out2, ref2, atol=1e-3, rtol=1e-3), "case 2 mismatch"

    print("KERNEL_OK")
</pallas_src>

<mosaic_0001>
module attributes {stable_mosaic.version = 11 : i64} {
  func.func @_vn_linear_leaky_relu_kernel(%arg0: i32, %arg1: i32, %arg2: memref<16x4xf32, #tpu.memory_space<vmem>>, %arg3: memref<1x4x128xf32, #tpu.memory_space<vmem>>, %arg4: memref<1x4x128xf32, #tpu.memory_space<vmem>>, %arg5: memref<1x4x128xf32, #tpu.memory_space<vmem>>, %arg6: memref<1x8x128xf32, #tpu.memory_space<vmem>>, %arg7: memref<1x8x128xf32, #tpu.memory_space<vmem>>, %arg8: memref<1x8x128xf32, #tpu.memory_space<vmem>>) attributes {dimension_semantics = [#tpu.dimension_semantics<parallel>, #tpu.dimension_semantics<parallel>], iteration_bounds = array<i64: 2, 2>, scalar_prefetch = 0 : i64, scratch_operands = 0 : i64, tpu.core_type = #tpu.core_type<tc>, window_params = [{pipeline_mode = #tpu.pipeline_mode<synchronous>, transform_indices = @transform_0, window_bounds = array<i64: 16, 4>}, {transform_indices = @transform_1, window_bounds = array<i64: 1, 4, 128>}, {transform_indices = @transform_2, window_bounds = array<i64: 1, 4, 128>}, {transform_indices = @transform_3, window_bounds = array<i64: 1, 4, 128>}, {transform_indices = @transform_4, window_bounds = array<i64: 1, 8, 128>}, {transform_indices = @transform_5, window_bounds = array<i64: 1, 8, 128>}, {transform_indices = @transform_6, window_bounds = array<i64: 1, 8, 128>}]} {
    %c0 = arith.constant 0 : index
    %c0_0 = arith.constant 0 : index
    %0 = vector.load %arg2[%c0, %c0_0] : memref<16x4xf32, #tpu.memory_space<vmem>>, vector<16x4xf32>
    %c0_1 = arith.constant 0 : index
    %c0_2 = arith.constant 0 : index
    %c0_3 = arith.constant 0 : index
    %1 = vector.load %arg3[%c0_1, %c0_2, %c0_3] : memref<1x4x128xf32, #tpu.memory_space<vmem>>, vector<1x4x128xf32>
    %2 = vector.shape_cast %1 : vector<1x4x128xf32> to vector<4x128xf32>
    %cst = arith.constant dense<0.000000e+00> : vector<16x128xf32>
    %3 = tpu.matmul %0, %2, %cst {dimension_numbers = #tpu.dot_dimension_numbers<[1], [0], [0], [1], [0, 0, 1, 1], [], []>} : vector<16x4xf32>, vector<4x128xf32>, vector<16x128xf32> -> vector<16x128xf32>
    %4 = vector.extract_strided_slice %3 {offsets = [0, 0], sizes = [8, 128], strides = [1, 1]} : vector<16x128xf32> to vector<8x128xf32>
    %5 = vector.extract_strided_slice %3 {offsets = [8, 0], sizes = [8, 128], strides = [1, 1]} : vector<16x128xf32> to vector<8x128xf32>
    %c0_4 = arith.constant 0 : index
    %c0_5 = arith.constant 0 : index
    %c0_6 = arith.constant 0 : index
    %6 = vector.load %arg4[%c0_4, %c0_5, %c0_6] : memref<1x4x128xf32, #tpu.memory_space<vmem>>, vector<1x4x128xf32>
    %7 = vector.shape_cast %6 : vector<1x4x128xf32> to vector<4x128xf32>
    %cst_7 = arith.constant dense<0.000000e+00> : vector<16x128xf32>
    %8 = tpu.matmul %0, %7, %cst_7 {dimension_numbers = #tpu.dot_dimension_numbers<[1], [0], [0], [1], [0, 0, 1, 1], [], []>} : vector<16x4xf32>, vector<4x128xf32>, vector<16x128xf32> -> vector<16x128xf32>
    %9 = vector.extract_strided_slice %8 {offsets = [0, 0], sizes = [8, 128], strides = [1, 1]} : vector<16x128xf32> to vector<8x128xf32>
    %10 = vector.extract_strided_slice %8 {offsets = [8, 0], sizes = [8, 128], strides = [1, 1]} : vector<16x128xf32> to vector<8x128xf32>
    %c0_8 = arith.constant 0 : index
    %c0_9 = arith.constant 0 : index
    %c0_10 = arith.constant 0 : index
    %11 = vector.load %arg5[%c0_8, %c0_9, %c0_10] : memref<1x4x128xf32, #tpu.memory_space<vmem>>, vector<1x4x128xf32>
    %12 = vector.shape_cast %11 : vector<1x4x128xf32> to vector<4x128xf32>
    %cst_11 = arith.constant dense<0.000000e+00> : vector<16x128xf32>
    %13 = tpu.matmul %0, %12, %cst_11 {dimension_numbers = #tpu.dot_dimension_numbers<[1], [0], [0], [1], [0, 0, 1, 1], [], []>} : vector<16x4xf32>, vector<4x128xf32>, vector<16x128xf32> -> vector<16x128xf32>
    %14 = vector.extract_strided_slice %13 {offsets = [0, 0], sizes = [8, 128], strides = [1, 1]} : vector<16x128xf32> to vector<8x128xf32>
    %15 = vector.extract_strided_slice %13 {offsets = [8, 0], sizes = [8, 128], strides = [1, 1]} : vector<16x128xf32> to vector<8x128xf32>
    %16 = arith.mulf %4, %5 : vector<8x128xf32>
    %17 = arith.mulf %9, %10 : vector<8x128xf32>
    %18 = arith.addf %16, %17 : vector<8x128xf32>
    %19 = arith.mulf %14, %15 : vector<8x128xf32>
    %20 = arith.addf %18, %19 : vector<8x128xf32>
    %21 = arith.mulf %5, %5 : vector<8x128xf32>
    %22 = arith.mulf %10, %10 : vector<8x128xf32>
    %23 = arith.addf %21, %22 : vector<8x128xf32>
    %24 = arith.mulf %15, %15 : vector<8x128xf32>
    %25 = arith.addf %23, %24 : vector<8x128xf32>
    %cst_12 = arith.constant 0.000000e+00 : f32
    %26 = vector.broadcast %cst_12 : f32 to vector<8x128xf32>
    %27 = arith.minimumf %20, %26 : vector<8x128xf32>
    %cst_13 = arith.constant 8.000000e-01 : f32
    %28 = vector.broadcast %cst_13 : f32 to vector<8x128xf32>
    %29 = arith.mulf %28, %27 : vector<8x128xf32>
    %cst_14 = arith.constant 9.99999997E-7 : f32
    %30 = vector.broadcast %cst_14 : f32 to vector<8x128xf32>
    %31 = arith.addf %25, %30 : vector<8x128xf32>
    %32 = tpu.reciprocal %31 : vector<8x128xf32> -> vector<8x128xf32>
    %33 = arith.mulf %29, %32 : vector<8x128xf32>
    %34 = arith.mulf %33, %5 : vector<8x128xf32>
    %35 = arith.subf %4, %34 : vector<8x128xf32>
    %c0_15 = arith.constant 0 : index
    %c0_16 = arith.constant 0 : index
    %c0_17 = arith.constant 0 : index
    %36 = vector.load %arg6[%c0_15, %c0_16, %c0_17] : memref<1x8x128xf32, #tpu.memory_space<vmem>>, vector<1x8x128xf32>
    %37 = vector.shape_cast %36 : vector<1x8x128xf32> to vector<8x128xf32>
    %38 = vector.shape_cast %35 : vector<8x128xf32> to vector<1x8x128xf32>
    tpu.vector_store %arg6[%c0_15, %c0_16, %c0_17], %38 {strides = array<i32>} : memref<1x8x128xf32, #tpu.memory_space<vmem>>, vector<1x8x128xf32>,
    %39 = arith.mulf %33, %10 : vector<8x128xf32>
    %40 = arith.subf %9, %39 : vector<8x128xf32>
    %c0_18 = arith.constant 0 : index
    %c0_19 = arith.constant 0 : index
    %c0_20 = arith.constant 0 : index
    %41 = vector.load %arg7[%c0_18, %c0_19, %c0_20] : memref<1x8x128xf32, #tpu.memory_space<vmem>>, vector<1x8x128xf32>
    %42 = vector.shape_cast %41 : vector<1x8x128xf32> to vector<8x128xf32>
    %43 = vector.shape_cast %40 : vector<8x128xf32> to vector<1x8x128xf32>
    tpu.vector_store %arg7[%c0_18, %c0_19, %c0_20], %43 {strides = array<i32>} : memref<1x8x128xf32, #tpu.memory_space<vmem>>, vector<1x8x128xf32>,
    %44 = arith.mulf %33, %15 : vector<8x128xf32>
    %45 = arith.subf %14, %44 : vector<8x128xf32>
    %c0_21 = arith.constant 0 : index
    %c0_22 = arith.constant 0 : index
    %c0_23 = arith.constant 0 : index
    %46 = vector.load %arg8[%c0_21, %c0_22, %c0_23] : memref<1x8x128xf32, #tpu.memory_space<vmem>>, vector<1x8x128xf32>
    %47 = vector.shape_cast %46 : vector<1x8x128xf32> to vector<8x128xf32>
    %48 = vector.shape_cast %45 : vector<8x128xf32> to vector<1x8x128xf32>
    tpu.vector_store %arg8[%c0_21, %c0_22, %c0_23], %48 {strides = array<i32>} : memref<1x8x128xf32, #tpu.memory_space<vmem>>, vector<1x8x128xf32>,
    return
  }
  func.func @transform_0(%arg0: i32, %arg1: i32) -> (i32, i32) {
    %c0_i32 = arith.constant 0 : i32
    %c0_i32_0 = arith.constant 0 : i32
    %c0_i32_1 = arith.constant 0 : i32
    return %c0_i32, %c0_i32_0 : i32, i32
  }
  func.func @transform_1(%arg0: i32, %arg1: i32) -> (i32, i32, i32) {
    %c0_i32 = arith.constant 0 : i32
    %0 = arith.addi %c0_i32, %arg1 : i32
    %c0_i32_0 = arith.constant 0 : i32
    %c0_i32_1 = arith.constant 0 : i32
    return %arg0, %c0_i32_0, %0 : i32, i32, i32
  }
  func.func @transform_2(%arg0: i32, %arg1: i32) -> (i32, i32, i32) {
    %c2_i32 = arith.constant 2 : i32
    %0 = arith.addi %c2_i32, %arg1 : i32
    %c0_i32 = arith.constant 0 : i32
    %c0_i32_0 = arith.constant 0 : i32
    return %arg0, %c0_i32, %0 : i32, i32, i32
  }
  func.func @transform_3(%arg0: i32, %arg1: i32) -> (i32, i32, i32) {
    %c4_i32 = arith.constant 4 : i32
    %0 = arith.addi %c4_i32, %arg1 : i32
    %c0_i32 = arith.constant 0 : i32
    %c0_i32_0 = arith.constant 0 : i32
    return %arg0, %c0_i32, %0 : i32, i32, i32
  }
  func.func @transform_4(%arg0: i32, %arg1: i32) -> (i32, i32, i32) {
    %c0_i32 = arith.constant 0 : i32
    %c0_i32_0 = arith.constant 0 : i32
    return %arg0, %c0_i32, %arg1 : i32, i32, i32
  }
  func.func @transform_5(%arg0: i32, %arg1: i32) -> (i32, i32, i32) {
    %c0_i32 = arith.constant 0 : i32
    %c0_i32_0 = arith.constant 0 : i32
    return %arg0, %c0_i32, %arg1 : i32, i32, i32
  }
  func.func @transform_6(%arg0: i32, %arg1: i32) -> (i32, i32, i32) {
    %c0_i32 = arith.constant 0 : i32
    %c0_i32_0 = arith.constant 0 : i32
    return %arg0, %c0_i32, %arg1 : i32, i32, i32
  }
}

</mosaic_0001>

<llo_original>
// kernel: tpu_custom_call.1
$region0: #{tpu_custom_call.1}
  #allocation0 [shape = 'u32[]', space=smem, size = 0x4, offset = 0x4, fixed_abs, tag = 'smem constant byte address 0x4 - core index']
  #allocation1 [shape = 'u32[72,128]{1,0:T(1,128)}', space=vmem, size = 0x9000, scoped, tag = 'internal scratch']
  %s0 = inlined_call_operand.vmem [shape: f32[16,4], index: 0, kind: input, shape index: {}]
  %s1 = inlined_call_operand.hbm [shape: f32[2,4,768], index: 1, kind: input, shape index: {}]
  %s2 = inlined_call_operand.hbm [shape: f32[2,4,768], index: 2, kind: input, shape index: {}]
  %s3 = inlined_call_operand.hbm [shape: f32[2,4,768], index: 3, kind: input, shape index: {}]
  %s4 = inlined_call_operand.hbm [shape: f32[2,8,256], index: 4, kind: output, shape index: {0}]
  %s5 = inlined_call_operand.hbm [shape: f32[2,8,256], index: 5, kind: output, shape index: {1}]
  %s6 = inlined_call_operand.hbm [shape: f32[2,8,256], index: 6, kind: output, shape index: {2}]
  %7 = xla_tuple %s4, %s5, %s6
  %s8 = sld [smem:[#allocation0]]
  $region77: #{tpu_custom_call.1} parent=0
    _
  %s10 = ssub.s32 1, %s8
  %s11 = scalar_select 0, %s10, %s8
  $region1: #{tpu_custom_call.1} parent=0
    #allocation2 [shape = 'u8[4096]{0}', space=vmem, size = 0x1000, scoped, tag = 'input window, operand 1']
    #allocation3 [shape = 's32[2]{0}', space=sflag, size = 0x8, scoped, tag = 'scoped memory for tpu_custom_call.1']
    #allocation4 [shape = 's32[2]{0}', space=sflag, size = 0x8, scoped, tag = 'scoped memory for tpu_custom_call.1']
    #allocation5 [shape = 'u8[4096]{0}', space=vmem, size = 0x1000, scoped, tag = 'input window, operand 2']
    #allocation6 [shape = 's32[2]{0}', space=sflag, size = 0x8, scoped, tag = 'scoped memory for tpu_custom_call.1']
    #allocation7 [shape = 'u8[4096]{0}', space=vmem, size = 0x1000, scoped, tag = 'input window, operand 3']
    #allocation8 [shape = 'u8[8192]{0}', space=vmem, size = 0x2000, scoped, tag = 'output window, operand 0']
    #allocation9 [shape = 'u8[8192]{0}', space=vmem, size = 0x2000, scoped, tag = 'output window, operand 1']
    #allocation10 [shape = 's32[2]{0}', space=sflag, size = 0x8, scoped, tag = 'scoped memory for tpu_custom_call.1']
    #allocation11 [shape = 'u8[8192]{0}', space=vmem, size = 0x2000, scoped, tag = 'output window, operand 2']
    %12 = vsyncpa [#allocation3], 0
    %s13 = scalar_lea.sflag [#allocation3], 1
    %14 = vsyncpa %s13, 0
    %15 = vsyncpa [#allocation6], 0
    %s16 = scalar_lea.sflag [#allocation6], 1
    %17 = vsyncpa %s16, 0
    %18 = vsyncpa [#allocation4], 0
    %s19 = scalar_lea.sflag [#allocation4], 1
    %20 = vsyncpa %s19, 0
    %21 = vsyncpa [#allocation10], 0
    %s22 = scalar_lea.sflag [#allocation10], 1
    %23 = vsyncpa %s22, 0
    loop: start=0, step=1, limit=6
    $region2: #{tpu_custom_call.1} parent=1 // loop_pre_header
      _
    $region3: #{tpu_custom_call.1} parent=1 // loop_header
      %s25 = sphi 0, %s29
      %p26 = scmp.ge.s32.totalorder %s25, 6
      %s32 = sphi 0, %s44
      %s33 = sphi 0, %s40
      %s34 = sphi 0, %s32
      %s35 = sphi 0, %s33
      %s36 = sphi 0, %s34
      %s37 = sphi 0, %s35
      %s45 = sphi 0, %s45
      %s47 = sphi 0, %s45
      %s48 = sphi 0, %s47
      %s62 = sphi 0, %s48
      %s70 = sphi 0, %s72
      %s73 = sphi 0, %s70
      %s74 = sphi 0, %s73
      %s90 = sphi 0, %s74
      %s100 = sphi 0, %s102
      %s103 = sphi 0, %s100
      %s104 = sphi 0, %s103
      %s120 = sphi 0, %s104
      %s130 = sphi 0, %s132
      %s133 = sphi 0, %s130
      %s134 = sphi 0, %s133
      %s150 = sphi 0, %s134
      %s158 = sphi 0, %s160
      %s161 = sphi 0, %s158
      %s162 = sphi 0, %s161
      %s178 = sphi 0, %s162
      %s186 = sphi 0, %s188
      %s189 = sphi 0, %s186
      %s190 = sphi 0, %s189
      %s206 = sphi 0, %s190
      %s214 = sphi 0, %s216
      %s217 = sphi 0, %s214
      %s218 = sphi 0, %s217
      %s234 = sphi 0, %s218
    $region4: #{tpu_custom_call.1} parent=1 // loop_header_branch
      %28 = sbr.rel (%p26) target = $region8
    $region5: #{tpu_custom_call.1} parent=1 // loop_body
      %s30 = ssub.s32 %s25, 1
      %s31 = ssub.s32 %s25, 2
      %s38 = sadd.s32 1, %s33
      %p39 = scmp.ge.s32.totalorder %s38, 2
      %s40 = scalar_select %p39, 0, %s38
      %s41 = sadd.s32 1, %s32
      %s42 = scalar_select %p39, %s41, %s32
      %p43 = scmp.ge.s32.totalorder %s42, 2
      %s44 = scalar_select %p43, 0, %s42
      %s46 = sadd.s32 %s45, 1
      %p49 = scmp.eq.s32.totalorder %s25, 3
      %p50 = scmp.ne.s32.totalorder %s45, %s47
      %p51 = scmp.eq.s32.totalorder %s25, 0
      %p52 = por %p50, %p51
      %p53 = scmp.ne.s32.totalorder %s45, %s47
      %p54 = scmp.eq.s32.totalorder %s30, 3
      %p55 = por %p53, %p54
      %p56 = scmp.ne.s32.totalorder %s47, %s48
      %p57 = scmp.eq.s32.totalorder %s30, 0
      %p58 = por %p56, %p57
      %p59 = scmp.ne.s32.totalorder %s47, %s48
      %p60 = scmp.eq.s32.totalorder %s31, 3
      %p61 = por %p59, %p60
      %p63 = scmp.ne.s32.totalorder %s48, %s62
      %p64 = scmp.eq.s32.totalorder %s31, 0
      %p65 = por %p63, %p64
      %s66 = ssub.s32 %s32, %s44
      %s67 = ssub.s32 %s33, %s40
      %s68 = sor.u32 %s66, %s67
      %p69 = scmp.eq.s32.totalorder %s68, 0
      %s71 = sadd.s32 %s70, 1
      %s72 = scalar_select %p69, %s70, %s71
      %p75 = pneg %p69
      %p76 = scmp.eq.s32.totalorder %s25, 3
      %p77 = por %p75, %p76
      %p78 = scmp.ne.s32.totalorder %s70, %s73
      %p79 = scmp.eq.s32.totalorder %s25, 0
      %p80 = por %p78, %p79
      %p81 = scmp.ne.s32.totalorder %s70, %s73
      %p82 = scmp.eq.s32.totalorder %s30, 3
      %p83 = por %p81, %p82
      %p84 = scmp.ne.s32.totalorder %s73, %s74
      %p85 = scmp.eq.s32.totalorder %s30, 0
      %p86 = por %p84, %p85
      %p87 = scmp.ne.s32.totalorder %s73, %s74
      %p88 = scmp.eq.s32.totalorder %s31, 3
      %p89 = por %p87, %p88
      %p91 = scmp.ne.s32.totalorder %s74, %s90
      %p92 = scmp.eq.s32.totalorder %s31, 0
      %p93 = por %p91, %p92
      %s94 = sadd.s32 %s33, 2
      %s95 = sadd.s32 %s40, 2
      %s96 = ssub.s32 %s32, %s44
      %s97 = ssub.s32 %s94, %s95
      %s98 = sor.u32 %s96, %s97
      %p99 = scmp.eq.s32.totalorder %s98, 0
      %s101 = sadd.s32 %s100, 1
      %s102 = scalar_select %p99, %s100, %s101
      %p105 = pneg %p99
      %p106 = scmp.eq.s32.totalorder %s25, 3
      %p107 = por %p105, %p106
      %p108 = scmp.ne.s32.totalorder %s100, %s103
      %p109 = scmp.eq.s32.totalorder %s25, 0
      %p110 = por %p108, %p109
      %p111 = scmp.ne.s32.totalorder %s100, %s103
      %p112 = scmp.eq.s32.totalorder %s30, 3
      %p113 = por %p111, %p112
      %p114 = scmp.ne.s32.totalorder %s103, %s104
      %p115 = scmp.eq.s32.totalorder %s30, 0
      %p116 = por %p114, %p115
      %p117 = scmp.ne.s32.totalorder %s103, %s104
      %p118 = scmp.eq.s32.totalorder %s31, 3
      %p119 = por %p117, %p118
      %p121 = scmp.ne.s32.totalorder %s104, %s120
      %p122 = scmp.eq.s32.totalorder %s31, 0
      %p123 = por %p121, %p122
      %s124 = sadd.s32 %s33, 4
      %s125 = sadd.s32 %s40, 4
      %s126 = ssub.s32 %s32, %s44
      %s127 = ssub.s32 %s124, %s125
      %s128 = sor.u32 %s126, %s127
      %p129 = scmp.eq.s32.totalorder %s128, 0
      %s131 = sadd.s32 %s130, 1
      %s132 = scalar_select %p129, %s130, %s131
      %p135 = pneg %p129
      %p136 = scmp.eq.s32.totalorder %s25, 3
      %p137 = por %p135, %p136
      %p138 = scmp.ne.s32.totalorder %s130, %s133
      %p139 = scmp.eq.s32.totalorder %s25, 0
      %p140 = por %p138, %p139
      %p141 = scmp.ne.s32.totalorder %s130, %s133
      %p142 = scmp.eq.s32.totalorder %s30, 3
      %p143 = por %p141, %p142
      %p144 = scmp.ne.s32.totalorder %s133, %s134
      %p145 = scmp.eq.s32.totalorder %s30, 0
      %p146 = por %p144, %p145
      %p147 = scmp.ne.s32.totalorder %s133, %s134
      %p148 = scmp.eq.s32.totalorder %s31, 3
      %p149 = por %p147, %p148
      %p151 = scmp.ne.s32.totalorder %s134, %s150
      %p152 = scmp.eq.s32.totalorder %s31, 0
      %p153 = por %p151, %p152
      %s154 = ssub.s32 %s32, %s44
      %s155 = ssub.s32 %s33, %s40
      %s156 = sor.u32 %s154, %s155
      %p157 = scmp.eq.s32.totalorder %s156, 0
      %s159 = sadd.s32 %s158, 1
      %s160 = scalar_select %p157, %s158, %s159
      %p163 = pneg %p157
      %p164 = scmp.eq.s32.totalorder %s25, 3
      %p165 = por %p163, %p164
      %p166 = scmp.ne.s32.totalorder %s158, %s161
      %p167 = scmp.eq.s32.totalorder %s25, 0
      %p168 = por %p166, %p167
      %p169 = scmp.ne.s32.totalorder %s158, %s161
      %p170 = scmp.eq.s32.totalorder %s30, 3
      %p171 = por %p169, %p170
      %p172 = scmp.ne.s32.totalorder %s161, %s162
      %p173 = scmp.eq.s32.totalorder %s30, 0
      %p174 = por %p172, %p173
      %p175 = scmp.ne.s32.totalorder %s161, %s162
      %p176 = scmp.eq.s32.totalorder %s31, 3
      %p177 = por %p175, %p176
      %p179 = scmp.ne.s32.totalorder %s162, %s178
      %p180 = scmp.eq.s32.totalorder %s31, 0
      %p181 = por %p179, %p180
      %s182 = ssub.s32 %s32, %s44
      %s183 = ssub.s32 %s33, %s40
      %s184 = sor.u32 %s182, %s183
      %p185 = scmp.eq.s32.totalorder %s184, 0
      %s187 = sadd.s32 %s186, 1
      %s188 = scalar_select %p185, %s186, %s187
      %p191 = pneg %p185
      %p192 = scmp.eq.s32.totalorder %s25, 3
      %p193 = por %p191, %p192
      %p194 = scmp.ne.s32.totalorder %s186, %s189
      %p195 = scmp.eq.s32.totalorder %s25, 0
      %p196 = por %p194, %p195
      %p197 = scmp.ne.s32.totalorder %s186, %s189
      %p198 = scmp.eq.s32.totalorder %s30, 3
      %p199 = por %p197, %p198
      %p200 = scmp.ne.s32.totalorder %s189, %s190
      %p201 = scmp.eq.s32.totalorder %s30, 0
      %p202 = por %p200, %p201
      %p203 = scmp.ne.s32.totalorder %s189, %s190
      %p204 = scmp.eq.s32.totalorder %s31, 3
      %p205 = por %p203, %p204
      %p207 = scmp.ne.s32.totalorder %s190, %s206
      %p208 = scmp.eq.s32.totalorder %s31, 0
      %p209 = por %p207, %p208
      %s210 = ssub.s32 %s32, %s44
      %s211 = ssub.s32 %s33, %s40
      %s212 = sor.u32 %s210, %s211
      %p213 = scmp.eq.s32.totalorder %s212, 0
      %s215 = sadd.s32 %s214, 1
      %s216 = scalar_select %p213, %s214, %s215
      %p219 = pneg %p213
      %p220 = scmp.eq.s32.totalorder %s25, 3
      %p221 = por %p219, %p220
      %p222 = scmp.ne.s32.totalorder %s214, %s217
      %p223 = scmp.eq.s32.totalorder %s25, 0
      %p224 = por %p222, %p223
      %p225 = scmp.ne.s32.totalorder %s214, %s217
      %p226 = scmp.eq.s32.totalorder %s30, 3
      %p227 = por %p225, %p226
      %p228 = scmp.ne.s32.totalorder %s217, %s218
      %p229 = scmp.eq.s32.totalorder %s30, 0
      %p230 = por %p228, %p229
      %p231 = scmp.ne.s32.totalorder %s217, %s218
      %p232 = scmp.eq.s32.totalorder %s31, 3
      %p233 = por %p231, %p232
      %p235 = scmp.ne.s32.totalorder %s218, %s234
      %p236 = scmp.eq.s32.totalorder %s31, 0
      %p237 = por %p235, %p236
      %p238 = scmp.le.s32.totalorder 1, %s25
      %p239 = scmp.lt.s32.totalorder %s25, 5
      %p240 = pnand %p238, %p239
      %p241 = pneg %p240
      // Predicated region
      $region9: #{tpu_custom_call.1} parent=5 // pred_check
        _
      $region10: #{tpu_custom_call.1} parent=5 // pred_check_branch
        %243 = sbr.rel (%p240) target = $region12
      $region11: #{tpu_custom_call.1} parent=5 // pred_region
        %s244 = ssub.s32 %s25, 1
        // Predicated region
        $region13: #{tpu_custom_call.1} parent=11 // pred_check
          %p245 = pneg %p58
        $region14: #{tpu_custom_call.1} parent=11 // pred_check_branch
          %247 = sbr.rel (%p245) target = $region16
        $region15: #{tpu_custom_call.1} parent=11 // pred_region
          _
        $region16: #{tpu_custom_call.1} parent=11 // pred_fallthru
          _
      $region12: #{tpu_custom_call.1} parent=5 // pred_fallthru
        _
      %p248 = scmp.lt.s32.totalorder %s25, 4
      // Predicated region
      $region17: #{tpu_custom_call.1} parent=5 // pred_check
        %p249 = pneg %p248
      $region18: #{tpu_custom_call.1} parent=5 // pred_check_branch
        %251 = sbr.rel (%p249) target = $region20
      $region19: #{tpu_custom_call.1} parent=5 // pred_region
        // Predicated region
        $region21: #{tpu_custom_call.1} parent=19 // pred_check
          %p252 = pneg %p80
        $region22: #{tpu_custom_call.1} parent=19 // pred_check_branch
          %254 = sbr.rel (%p252) target = $region24
        $region23: #{tpu_custom_call.1} parent=19 // pred_region
          %s255 = sand.u32 %s70, 1
          %s256 = scalar_lea.sflag [#allocation3], %s255
          %s257 = sand.u32 %s70, 1
          %s258 = smul.addr %s257, 4
          %s259 = scalar_lea.vmem [#allocation2], %s258
          %261 = vsyncadd %s256, 0
          %s262 = smul.addr %s32, 6
          %s263 = sadd.s32 %s33, %s262
          %s264 = smul.addr %s263, 4
          %s265 = scalar_lea.hbm %s1, %s264
          %s267 = sshll.u32 %s265, 4
          %s268 = int_to_ptr.hbm [resolvable:$true] %s267
          %s269 = sshll.u32 %s259, 4
          %s270 = int_to_ptr.vmem [resolvable:$true] %s269
          %272 = dma.hbm_to_vmem [thread:$0]  %s268, 64, %s270, %s256
        $region24: #{tpu_custom_call.1} parent=19 // pred_fallthru
          _
        // Predicated region
        $region25: #{tpu_custom_call.1} parent=19 // pred_check
          %p273 = pneg %p110
        $region26: #{tpu_custom_call.1} parent=19 // pred_check_branch
          %275 = sbr.rel (%p273) target = $region28
        $region27: #{tpu_custom_call.1} parent=19 // pred_region
          %s276 = sand.u32 %s25, 1
          %s277 = scalar_lea.sflag [#allocation6], %s276
          %s278 = sand.u32 %s100, 1
          %s279 = smul.addr %s278, 4
          %s280 = scalar_lea.vmem [#allocation5], %s279
          %s281 = sadd.s32 %s33, 2
          %283 = vsyncadd %s277, 0
          %s284 = smul.addr %s32, 6
          %s285 = sadd.s32 %s281, %s284
          %s286 = smul.addr %s285, 4
          %s287 = scalar_lea.hbm %s2, %s286
          %s289 = sshll.u32 %s287, 4
          %s290 = int_to_ptr.hbm [resolvable:$true] %s289
          %s291 = sshll.u32 %s280, 4
          %s292 = int_to_ptr.vmem [resolvable:$true] %s291
          %294 = dma.hbm_to_vmem [thread:$0]  %s290, 64, %s292, %s277
        $region28: #{tpu_custom_call.1} parent=19 // pred_fallthru
          _
        // Predicated region
        $region29: #{tpu_custom_call.1} parent=19 // pred_check
          %p295 = pneg %p140
        $region30: #{tpu_custom_call.1} parent=19 // pred_check_branch
          %297 = sbr.rel (%p295) target = $region32
        $region31: #{tpu_custom_call.1} parent=19 // pred_region
          %s298 = sand.u32 %s25, 1
          %s299 = scalar_lea.sflag [#allocation6], %s298
          %s300 = sand.u32 %s130, 1
          %s301 = smul.addr %s300, 4
          %s302 = scalar_lea.vmem [#allocation7], %s301
          %s303 = sadd.s32 %s33, 4
          %305 = vsyncadd %s299, 0
          %s306 = smul.addr %s32, 6
          %s307 = sadd.s32 %s303, %s306
          %s308 = smul.addr %s307, 4
          %s309 = scalar_lea.hbm %s3, %s308
          %s311 = sshll.u32 %s309, 4
          %s312 = int_to_ptr.hbm [resolvable:$true] %s311
          %s313 = sshll.u32 %s302, 4
          %s314 = int_to_ptr.vmem [resolvable:$true] %s313
          %316 = dma.hbm_to_vmem [thread:$0]  %s312, 64, %s314, %s299
        $region32: #{tpu_custom_call.1} parent=19 // pred_fallthru
          _
      $region20: #{tpu_custom_call.1} parent=5 // pred_fallthru
        _
      %p317 = scmp.le.s32.totalorder 1, %s25
      %p318 = scmp.lt.s32.totalorder %s25, 5
      %p319 = pnand %p317, %p318
      %p320 = pneg %p319
      // Predicated region
      $region33: #{tpu_custom_call.1} parent=5 // pred_check
        _
      $region34: #{tpu_custom_call.1} parent=5 // pred_check_branch
        %322 = sbr.rel (%p319) target = $region36
      $region35: #{tpu_custom_call.1} parent=5 // pred_region
        %s323 = ssub.s32 %s25, 1
        %s324 = sand.u32 %s73, 1
        %s325 = scalar_lea.sflag [#allocation3], %s324
        %s326 = sand.u32 %s73, 1
        %s327 = smul.addr %s326, 4
        %s328 = scalar_lea.vmem [#allocation2], %s327
        // Predicated region
        $region37: #{tpu_custom_call.1} parent=35 // pred_check
          %p329 = pneg %p86
        $region38: #{tpu_custom_call.1} parent=35 // pred_check_branch
          %331 = sbr.rel (%p329) target = $region40
        $region39: #{tpu_custom_call.1} parent=35 // pred_region
          %333 = dma.done %s325, 64
        $region40: #{tpu_custom_call.1} parent=35 // pred_fallthru
          _
        %s334 = sand.u32 %s30, 1
        %s335 = scalar_lea.sflag [#allocation6], %s334
        %s336 = sand.u32 %s103, 1
        %s337 = smul.addr %s336, 4
        %s338 = scalar_lea.vmem [#allocation5], %s337
        // Predicated region
        $region41: #{tpu_custom_call.1} parent=35 // pred_check
          %p339 = pneg %p116
        $region42: #{tpu_custom_call.1} parent=35 // pred_check_branch
          %341 = sbr.rel (%p339) target = $region44
        $region43: #{tpu_custom_call.1} parent=35 // pred_region
          %343 = dma.done %s335, 64
        $region44: #{tpu_custom_call.1} parent=35 // pred_fallthru
          _
        %s344 = sand.u32 %s30, 1
        %s345 = scalar_lea.sflag [#allocation6], %s344
        %s346 = sand.u32 %s133, 1
        %s347 = smul.addr %s346, 4
        %s348 = scalar_lea.vmem [#allocation7], %s347
        // Predicated region
        $region45: #{tpu_custom_call.1} parent=35 // pred_check
          %p349 = pneg %p146
        $region46: #{tpu_custom_call.1} parent=35 // pred_check_branch
          %351 = sbr.rel (%p349) target = $region48
        $region47: #{tpu_custom_call.1} parent=35 // pred_region
          %353 = dma.done %s345, 64
        $region48: #{tpu_custom_call.1} parent=35 // pred_fallthru
          _
        %p354 = pneg %p58
        %p355 = pneg %p55
        %s356 = sand.u32 %s73, 1
        %s357 = scalar_lea.sflag [#allocation3], %s356
        %s358 = sand.u32 %s73, 1
        %s359 = smul.addr %s358, 4
        %s360 = scalar_lea.vmem [#allocation2], %s359
        %p361 = pneg %p86
        %p362 = pneg %p83
        %s363 = sand.u32 %s30, 1
        %s364 = scalar_lea.sflag [#allocation6], %s363
        %s365 = sand.u32 %s103, 1
        %s366 = smul.addr %s365, 4
        %s367 = scalar_lea.vmem [#allocation5], %s366
        %p368 = pneg %p116
        %p369 = pneg %p113
        %s370 = sand.u32 %s30, 1
        %s371 = scalar_lea.sflag [#allocation6], %s370
        %s372 = sand.u32 %s133, 1
        %s373 = smul.addr %s372, 4
        %s374 = scalar_lea.vmem [#allocation7], %s373
        %p375 = pneg %p146
        %p376 = pneg %p143
        %p377 = pneg %p174
        %p378 = pneg %p171
        %s379 = sand.u32 %s161, 1
        %s380 = scalar_lea.sflag [#allocation4], %s379
        %s381 = sand.u32 %s161, 1
        %s382 = smul.addr %s381, 8
        %s383 = scalar_lea.vmem [#allocation8], %s382
        %p384 = pneg %p202
        %p385 = pneg %p199
        %s386 = sand.u32 %s30, 1
        %s387 = scalar_lea.sflag [#allocation10], %s386
        %s388 = sand.u32 %s189, 1
        %s389 = smul.addr %s388, 8
        %s390 = scalar_lea.vmem [#allocation9], %s389
        %p391 = pneg %p230
        %p392 = pneg %p227
        %s393 = sand.u32 %s30, 1
        %s394 = scalar_lea.sflag [#allocation10], %s393
        %s395 = sand.u32 %s217, 1
        %s396 = smul.addr %s395, 8
        %s397 = scalar_lea.vmem [#allocation11], %s396
        %s398 = sadd.s32 %s35, 2
        %s399 = sadd.s32 %s35, 4
        %v400 = vld [vmem:[%s0] sm:$0xff]
        %v401 = vld [vmem:[%s0 + $0x8] sm:$0xff]
        %v402 = vld [vmem:[%s328] sm:$0xf]
        %vm403 = vcmask 31744
        %v405 = vsel %vm403, %v400, 0
        %v408 = vsel %vm403, %v401, 0
        %vm410 = vcmask 1043456
        %v412 = vsel %vm410, %v402, 0
        %414 = vmatpush.msra.mxu0 0.0
        %415 = vmatpush.msra.mxu0 0.0
        %416 = vmatpush.msra.mxu0 0.0
        %417 = vmatpush.msra.mxu0 0.0
        %418 = vmatpush.msra.mxu0 0.0
        %419 = vmatpush.msra.mxu0 0.0
        %420 = vmatpush.msra.mxu0 0.0
        %421 = vmatpush.msra.mxu0 0.0
        %422 = vmatpush.msra.mxu0 0.0
        %423 = vmatpush.msra.mxu0 0.0
        %424 = vmatpush.msra.mxu0 0.0
        %425 = vmatpush.msra.mxu0 0.0
        %426 = vmatpush.msra.mxu0 0.0
        %427 = vmatpush.msra.mxu0 0.0
        %428 = vmatpush.msra.mxu0 0.0
        %429 = vmatpush.msra.mxu0 %v412
        %430 = vmatmul.f32.gmra.mxu0 %v405
        %v431 = vpop.f32.mrf.mxu0
        %v432 = vadd.f32 0.0, %v431
        %433 = vmatmul.f32.gmra.mxu0 %v408
        %v434 = vpop.f32.mrf.mxu0
        %v435 = vadd.f32 0.0, %v434
        %436 = vdwg.mxu0
        %v437 = vld [vmem:[%s338] sm:$0xf]
        %v439 = vsel %vm410, %v437, 0
        %441 = vmatpush.msra.mxu0 0.0
        %442 = vmatpush.msra.mxu0 0.0
        %443 = vmatpush.msra.mxu0 0.0
        %444 = vmatpush.msra.mxu0 0.0
        %445 = vmatpush.msra.mxu0 0.0
        %446 = vmatpush.msra.mxu0 0.0
        %447 = vmatpush.msra.mxu0 0.0
        %448 = vmatpush.msra.mxu0 0.0
        %449 = vmatpush.msra.mxu0 0.0
        %450 = vmatpush.msra.mxu0 0.0
        %451 = vmatpush.msra.mxu0 0.0
        %452 = vmatpush.msra.mxu0 0.0
        %453 = vmatpush.msra.mxu0 0.0
        %454 = vmatpush.msra.mxu0 0.0
        %455 = vmatpush.msra.mxu0 0.0
        %456 = vmatpush.msra.mxu0 %v439
        %457 = vmatmul.f32.gmra.mxu0 %v405
        %v458 = vpop.f32.mrf.mxu0
        %v459 = vadd.f32 0.0, %v458
        %460 = vmatmul.f32.gmra.mxu0 %v408
        %v461 = vpop.f32.mrf.mxu0
        %v462 = vadd.f32 0.0, %v461
        %463 = vdwg.mxu0
        %v464 = vld [vmem:[%s348] sm:$0xf]
        %v466 = vsel %vm410, %v464, 0
        %468 = vmatpush.msra.mxu0 0.0
        %469 = vmatpush.msra.mxu0 0.0
        %470 = vmatpush.msra.mxu0 0.0
        %471 = vmatpush.msra.mxu0 0.0
        %472 = vmatpush.msra.mxu0 0.0
        %473 = vmatpush.msra.mxu0 0.0
        %474 = vmatpush.msra.mxu0 0.0
        %475 = vmatpush.msra.mxu0 0.0
        %476 = vmatpush.msra.mxu0 0.0
        %477 = vmatpush.msra.mxu0 0.0
        %478 = vmatpush.msra.mxu0 0.0
        %479 = vmatpush.msra.mxu0 0.0
        %480 = vmatpush.msra.mxu0 0.0
        %481 = vmatpush.msra.mxu0 0.0
        %482 = vmatpush.msra.mxu0 0.0
        %483 = vmatpush.msra.mxu0 %v466
        %484 = vmatmul.f32.gmra.mxu0 %v405
        %v485 = vpop.f32.mrf.mxu0
        %v486 = vadd.f32 0.0, %v485
        %487 = vmatmul.f32.gmra.mxu0 %v408
        %v488 = vpop.f32.mrf.mxu0
        %v489 = vadd.f32 0.0, %v488
        %490 = vdwg.mxu0
        %v491 = vmul.f32 %v432, %v435
        %v492 = vmul.f32 %v459, %v462
        %v493 = vadd.f32 %v491, %v492
        %v494 = vmul.f32 %v486, %v489
        %v495 = vadd.f32 %v493, %v494
        %v496 = vmul.f32 %v435, %v435
        %v497 = vmul.f32 %v462, %v462
        %v498 = vadd.f32 %v496, %v497
        %v499 = vmul.f32 %v489, %v489
        %v500 = vadd.f32 %v498, %v499
        %v501 = vmin.f32 %v495, 0.0
        %v502 = vmul.f32 %v501, 0.8
        %v503 = vadd.f32 %v500, 1e-06
        %v504 = vrcp.pop %v503
        %v505 = vmul.f32 %v503, %v504
        %v506 = vsub.f32 1.0, %v505
        %v507 = vmul.f32 %v504, %v506
        %v508 = vadd.f32 %v504, %v507
        %vm509 = vweird.f32 %v503
        %vm510 = vweird.f32 %v504
        %vm511 = vmor %vm509, %vm510
        %v512 = vsel %vm511, %v504, %v508
        %v513 = vand.u32 2147483647, %v503
        %vm514 = vcmp.eq.f32.partialorder %v513, 8.507059e+37
        %v515 = vand.u32 %v503, 2147483648
        %v516 = vor.u32 1.1754944e-38, %v515
        %v517 = vsel %vm514, %v516, %v512
        %v518 = vmul.f32 %v502, %v517
        %v519 = vmul.f32 %v518, %v435
        %v520 = vsub.f32 %v432, %v519
        %521 = vst [vmem:[%s383] sm:$0xff] %v520
        %v522 = vmul.f32 %v518, %v462
        %v523 = vsub.f32 %v459, %v522
        %524 = vst [vmem:[%s390] sm:$0xff] %v523
        %v525 = vmul.f32 %v518, %v489
        %v526 = vsub.f32 %v486, %v525
        %527 = vst [vmem:[%s397] sm:$0xff] %v526
        %s528 = sand.u32 %s161, 1
        %s529 = scalar_lea.sflag [#allocation4], %s528
        %s530 = sand.u32 %s161, 1
        %s531 = smul.addr %s530, 8
        %s532 = scalar_lea.vmem [#allocation8], %s531
        %s533 = sand.u32 %s30, 1
        %s534 = scalar_lea.sflag [#allocation10], %s533
        %s535 = sand.u32 %s189, 1
        %s536 = smul.addr %s535, 8
        %s537 = scalar_lea.vmem [#allocation9], %s536
        %s538 = sand.u32 %s30, 1
        %s539 = scalar_lea.sflag [#allocation10], %s538
        %s540 = sand.u32 %s217, 1
        %s541 = smul.addr %s540, 8
        %s542 = scalar_lea.vmem [#allocation11], %s541
        // Predicated region
        $region49: #{tpu_custom_call.1} parent=35 // pred_check
          %p543 = pneg %p171
        $region50: #{tpu_custom_call.1} parent=35 // pred_check_branch
          %545 = sbr.rel (%p543) target = $region52
        $region51: #{tpu_custom_call.1} parent=35 // pred_region
          %547 = vsyncadd %s529, 0
          %s548 = smul.addr %s34, 2
          %s549 = sadd.s32 %s35, %s548
          %s550 = smul.addr %s549, 8
          %s551 = scalar_lea.hbm %s4, %s550
          %s553 = sshll.u32 %s532, 4
          %s554 = int_to_ptr.vmem [resolvable:$true] %s553
          %s555 = sshll.u32 %s551, 4
          %s556 = int_to_ptr.hbm [resolvable:$true] %s555
          %558 = dma.vmem_to_hbm [thread:$0]  %s554, 128, %s556, %s529
        $region52: #{tpu_custom_call.1} parent=35 // pred_fallthru
          _
        // Predicated region
        $region53: #{tpu_custom_call.1} parent=35 // pred_check
          %p559 = pneg %p199
        $region54: #{tpu_custom_call.1} parent=35 // pred_check_branch
          %561 = sbr.rel (%p559) target = $region56
        $region55: #{tpu_custom_call.1} parent=35 // pred_region
          %563 = vsyncadd %s534, 0
          %s564 = smul.addr %s34, 2
          %s565 = sadd.s32 %s35, %s564
          %s566 = smul.addr %s565, 8
          %s567 = scalar_lea.hbm %s5, %s566
          %s569 = sshll.u32 %s537, 4
          %s570 = int_to_ptr.vmem [resolvable:$true] %s569
          %s571 = sshll.u32 %s567, 4
          %s572 = int_to_ptr.hbm [resolvable:$true] %s571
          %574 = dma.vmem_to_hbm [thread:$0]  %s570, 128, %s572, %s534
        $region56: #{tpu_custom_call.1} parent=35 // pred_fallthru
          _
        // Predicated region
        $region57: #{tpu_custom_call.1} parent=35 // pred_check
          %p575 = pneg %p227
        $region58: #{tpu_custom_call.1} parent=35 // pred_check_branch
          %577 = sbr.rel (%p575) target = $region60
        $region59: #{tpu_custom_call.1} parent=35 // pred_region
          %579 = vsyncadd %s539, 0
          %s580 = smul.addr %s34, 2
          %s581 = sadd.s32 %s35, %s580
          %s582 = smul.addr %s581, 8
          %s583 = scalar_lea.hbm %s6, %s582
          %s585 = sshll.u32 %s542, 4
          %s586 = int_to_ptr.vmem [resolvable:$true] %s585
          %s587 = sshll.u32 %s583, 4
          %s588 = int_to_ptr.hbm [resolvable:$true] %s587
          %590 = dma.vmem_to_hbm [thread:$0]  %s586, 128, %s588, %s539
        $region60: #{tpu_custom_call.1} parent=35 // pred_fallthru
          _
      $region36: #{tpu_custom_call.1} parent=5 // pred_fallthru
        _
      %p591 = scmp.le.s32.totalorder 2, %s25
      // Predicated region
      $region61: #{tpu_custom_call.1} parent=5 // pred_check
        %p592 = pneg %p591
      $region62: #{tpu_custom_call.1} parent=5 // pred_check_branch
        %594 = sbr.rel (%p592) target = $region64
      $region63: #{tpu_custom_call.1} parent=5 // pred_region
        %s595 = ssub.s32 %s25, 2
        // Predicated region
        $region65: #{tpu_custom_call.1} parent=63 // pred_check
          %p596 = pneg %p177
        $region66: #{tpu_custom_call.1} parent=63 // pred_check_branch
          %598 = sbr.rel (%p596) target = $region68
        $region67: #{tpu_custom_call.1} parent=63 // pred_region
          %s599 = sand.u32 %s162, 1
          %s600 = scalar_lea.sflag [#allocation4], %s599
          %s601 = sand.u32 %s162, 1
          %s602 = smul.addr %s601, 8
          %s603 = scalar_lea.vmem [#allocation8], %s602
          %605 = dma.done %s600, 128
        $region68: #{tpu_custom_call.1} parent=63 // pred_fallthru
          _
        // Predicated region
        $region69: #{tpu_custom_call.1} parent=63 // pred_check
          %p606 = pneg %p205
        $region70: #{tpu_custom_call.1} parent=63 // pred_check_branch
          %608 = sbr.rel (%p606) target = $region72
        $region71: #{tpu_custom_call.1} parent=63 // pred_region
          %s609 = sand.u32 %s31, 1
          %s610 = scalar_lea.sflag [#allocation10], %s609
          %s611 = sand.u32 %s190, 1
          %s612 = smul.addr %s611, 8
          %s613 = scalar_lea.vmem [#allocation9], %s612
          %615 = dma.done %s610, 128
        $region72: #{tpu_custom_call.1} parent=63 // pred_fallthru
          _
        // Predicated region
        $region73: #{tpu_custom_call.1} parent=63 // pred_check
          %p616 = pneg %p233
        $region74: #{tpu_custom_call.1} parent=63 // pred_check_branch
          %618 = sbr.rel (%p616) target = $region76
        $region75: #{tpu_custom_call.1} parent=63 // pred_region
          %s619 = sand.u32 %s31, 1
          %s620 = scalar_lea.sflag [#allocation10], %s619
          %s621 = sand.u32 %s218, 1
          %s622 = smul.addr %s621, 8
          %s623 = scalar_lea.vmem [#allocation11], %s622
          %625 = dma.done %s620, 128
        $region76: #{tpu_custom_call.1} parent=63 // pred_fallthru
          _
      $region64: #{tpu_custom_call.1} parent=5 // pred_fallthru
        _
    $region6: #{tpu_custom_call.1} parent=1 // loop_footer
      %s29 = sadd.s32 1, %s25
    $region7: #{tpu_custom_call.1} parent=1 // loop_footer_branch
      %24 = sbr.rel target = $region3
    $region8: #{tpu_custom_call.1} parent=1 // loop_exit
      _
    %626 = vsyncpa [#allocation3], 1
    %s627 = scalar_lea.sflag [#allocation3], 1
    %628 = vsyncpa %s627, 1
    %629 = vsyncpa [#allocation6], 1
    %s630 = scalar_lea.sflag [#allocation6], 1
    %631 = vsyncpa %s630, 1
    %632 = vsyncpa [#allocation4], 1
    %s633 = scalar_lea.sflag [#allocation4], 1
    %634 = vsyncpa %s633, 1
    %635 = vsyncpa [#allocation10], 1
    %s636 = scalar_lea.sflag [#allocation10], 1
    %637 = vsyncpa %s636, 1

</llo_original>
